<compile_context>
chip_gen: v5e
topology: v5e:2x2
jax: 0.10.0
libtpu: 0.0.40
codegen_flags: <defaults>
</compile_context>

<pallas_src>
import functools

import jax
import jax.numpy as jnp
from jax.experimental import pallas as pl
from jax.experimental.pallas import tpu as pltpu


# ----------------------------------------------------------------------------
# Pallas kernel: fused (matmul + bias + ReLU), lane-dense on the pixel dim
# ----------------------------------------------------------------------------
def _mm_bias_relu_kernel(w_ref, t_ref, b_ref, o_ref, *, relu):
    """out = W @ taps (+ bias, + ReLU) in a single MXU matmul.

    w_ref : (C_out, KK*C_in)   bf16   contraction dim 27..72
    t_ref : (KK*C_in, N)       bf16   N = B*Ho*Wo on the lane axis
    b_ref : (C_out, 1)         f32
    o_ref : (C_out, N)         bf16   lane-dense store, cast after f32 epilogue
    """
    acc = jnp.dot(w_ref[...], t_ref[...], preferred_element_type=jnp.float32)
    acc = acc + b_ref[...]                 # (C_out, 1) lane-broadcast, f32 (v5e-safe)
    if relu:
        acc = jnp.maximum(acc, 0.0)
    o_ref[...] = acc.astype(o_ref.dtype)   # bf16 at the store only


def _pallas_mm_bias_relu(w_mat, taps, bias, *, relu):
    M, K = w_mat.shape
    N = taps.shape[1]
    cost = pl.CostEstimate(
        flops=2 * M * K * N,
        transcendentals=0,
        bytes_accessed=M * K * 2 + K * N * 2 + M * 4 + M * N * 2,
    )
    vmem = pl.BlockSpec(memory_space=pltpu.MemorySpace.VMEM)
    # No grid: batch is folded into the lane dim; at this size a grid only adds
    # per-step pipeline overhead.  (For large images: N-tile "parallel" grid.)
    return pl.pallas_call(
        functools.partial(_mm_bias_relu_kernel, relu=relu),
        out_shape=jax.ShapeDtypeStruct((M, N), jnp.bfloat16),
        in_specs=[vmem, vmem, vmem],
        out_specs=vmem,
        cost_estimate=cost,
    )(w_mat, taps, bias)


# ----------------------------------------------------------------------------
# Layout glue (plain JAX) on the contraction-major (C, B, H, W) layout
# ----------------------------------------------------------------------------
def _pad_hw(x, p, mode):
    """Pad the two trailing spatial dims of (C, B, H, W)."""
    if p == 0:
        return x
    if mode == "zeros":
        return jnp.pad(x, ((0, 0), (0, 0), (p, p), (p, p)))
    # circular (wrap) via slice+concat; p == H / p == W wraps exactly once.
    x = jnp.concatenate([x[:, :, -p:], x, x[:, :, :p]], axis=2)
    x = jnp.concatenate([x[..., -p:], x, x[..., :p]], axis=3)
    return x


def _im2col(xp, K, stride, dilation, Ho, Wo):
    """(C, B, Hp, Wp) padded -> (K*K*C, B*Ho*Wo) taps, (ky, kx, c)-major rows."""
    C, B = xp.shape[0], xp.shape[1]
    N = B * Ho * Wo
    blocks = []
    for ky in range(K):
        for kx in range(K):
            dy, dx = ky * dilation, kx * dilation
            t = xp[:, :, dy:dy + (Ho - 1) * stride + 1:stride,
                         dx:dx + (Wo - 1) * stride + 1:stride]
            blocks.append(t.reshape(C, N))
    return jnp.concatenate(blocks, axis=0)


def conv2d(x_cbhw, w_hwio, b, *, stride=1, padding=1, dilation=1,
           pad_mode="zeros", relu=True, min_pallas_lanes=128):
    """2-D conv on contraction-major activations: (C_in,B,H,W) -> (C_out,B,Ho,Wo)."""
    C_in, B, H, W = x_cbhw.shape
    K = w_hwio.shape[0]
    C_out = w_hwio.shape[-1]

    xp = _pad_hw(x_cbhw, padding, pad_mode)
    eff = (K - 1) * dilation + 1
    Ho = (H + 2 * padding - eff) // stride + 1
    Wo = (W + 2 * padding - eff) // stride + 1
    N = B * Ho * Wo

    taps = _im2col(xp, K, stride, dilation, Ho, Wo)            # (KK*C_in, N)
    w_mat = w_hwio.transpose(3, 0, 1, 2).reshape(C_out, K * K * C_in)

    if N >= min_pallas_lanes:
        out = _pallas_mm_bias_relu(w_mat.astype(jnp.bfloat16),
                                   taps.astype(jnp.bfloat16),
                                   b.reshape(C_out, 1).astype(jnp.float32),
                                   relu=relu)
    else:
        # N < one vreg lane width: a pallas dispatch costs more than the math
        # (masked vst, ~zero MXU fill) -> plain jnp, like the classifier head.
        acc = jnp.dot(w_mat.astype(jnp.float32), taps.astype(jnp.float32))
        acc = acc + b.reshape(C_out, 1).astype(jnp.float32)
        if relu:
            acc = jnp.maximum(acc, 0.0)
        out = acc
    # minor-dim split only -> free reshape, no transpose back to NHWC/NCHW.
    return out.reshape(C_out, B, Ho, Wo)


# ----------------------------------------------------------------------------
# ECO layer (pixel-unshuffle + circular conv, weights pre-sliced to `hidden`)
# ----------------------------------------------------------------------------
def eco_forward(x_cbhw, w_hwio, b, *, hidden, stride, padding, dilation, relu):
    C, B, H, W = x_cbhw.shape
    if stride > 1:
        # einops 'b c (w k1) (h k2) -> b (c k1 k2) w h' (standard pixel-unshuffle)
        # on (C,B,H,W): new channel order (c, k1, k2), k1 off H, k2 off W.
        x = x_cbhw.reshape(C, B, H // stride, stride, W // stride, stride)
        x = x.transpose(0, 3, 5, 1, 2, 4)          # (C, k1, k2, B, h, w)
        x = x.reshape(C * stride * stride, B, H // stride, W // stride)
    else:
        x = x_cbhw
    in_ch = hidden * stride * stride
    out_ch = hidden
    max_ch = max(in_ch, out_ch)
    if in_ch < max_ch:                             # out_channels > in_channels
        x = jnp.pad(x, ((0, max_ch - in_ch), (0, 0), (0, 0), (0, 0)))
    # Perf fix (review #2): slice weight/bias to the needed output channels
    # BEFORE the conv; mathematically identical to conv-then-slice.
    w_used = w_hwio[..., :out_ch]
    b_used = b[:out_ch]
    return conv2d(x, w_used, b_used, stride=1, padding=padding,
                  dilation=dilation, pad_mode="circular", relu=relu)


# ----------------------------------------------------------------------------
# Model definition (mirrors CNN_ECO.make_layers)
# ----------------------------------------------------------------------------
def make_layer_configs(num_layers, hidden):
    cfgs = []
    in_ch = 3
    for stride in (1, 2, 2):
        cfgs.append(dict(kind="conv", in_ch=in_ch, out_ch=hidden, k=3, pad=1,
                         dil=1, stride=stride, pad_mode="zeros"))
        in_ch = hidden
    for i in range(num_layers):
        if i == num_layers // 2 - 1:
            cfgs.append(dict(kind="eco", hidden=hidden, k=3, stride=3, pad=3, dil=3))
        elif i > num_layers - 2:
            cfgs.append(dict(kind="eco", hidden=hidden, k=3, stride=3, pad=1, dil=1))
        elif i < 2:
            cfgs.append(dict(kind="conv", in_ch=in_ch, out_ch=hidden, k=3, pad=1,
                             dil=1, stride=1, pad_mode="zeros"))
        elif i > num_layers // 2 - 1:
            cfgs.append(dict(kind="conv", in_ch=hidden, out_ch=hidden, k=3, pad=1,
                             dil=1, stride=1, pad_mode="circular"))
        else:
            cfgs.append(dict(kind="conv", in_ch=hidden, out_ch=hidden, k=3, pad=3,
                             dil=3, stride=1, pad_mode="circular"))
    return cfgs


def init_params(key, cfgs, hidden, num_classes):
    params = []
    for cfg in cfgs:
        key, kw, kb = jax.random.split(key, 3)
        if cfg["kind"] == "conv":
            ci, co = cfg["in_ch"], cfg["out_ch"]
        else:
            mc = max(cfg["hidden"] * cfg["stride"] ** 2, cfg["hidden"])
            ci = co = mc
        fan_in = cfg["k"] * cfg["k"] * ci
        w = jax.random.normal(kw, (cfg["k"], cfg["k"], ci, co), jnp.float32)
        w = w / jnp.sqrt(jnp.float32(fan_in))
        b = 0.01 * jax.random.normal(kb, (co,), jnp.float32)
        params.append((w, b))
    key, kw, kb = jax.random.split(key, 3)
    wfc = jax.random.normal(kw, (hidden, num_classes), jnp.float32) / jnp.sqrt(
        jnp.float32(hidden))
    bfc = 0.01 * jax.random.normal(kb, (num_classes,), jnp.float32)
    return params, (wfc, bfc)


def cnn_eco_forward(x_nchw, cfgs, params, fc_params):
    # Contraction-major (C, B, H, W) activation layout end-to-end (review #4).
    x = jnp.transpose(x_nchw, (1, 0, 2, 3))          # NCHW -> (C, B, H, W)
    for cfg, (w, b) in zip(cfgs, params):
        if cfg["kind"] == "conv":
            x = conv2d(x, w, b, stride=cfg["stride"], padding=cfg["pad"],
                       dilation=cfg["dil"], pad_mode=cfg["pad_mode"], relu=True)
        else:
            x = eco_forward(x, w, b, hidden=cfg["hidden"], stride=cfg["stride"],
                            padding=cfg["pad"], dilation=cfg["dil"], relu=True)
    C, B, Ho, Wo = x.shape
    # PyTorch flattens NCHW; final spatial is 1x1 here so this matches exactly.
    feat = jnp.transpose(x, (1, 0, 2, 3)).reshape(B, C * Ho * Wo)
    feat = feat.astype(jnp.float32)
    # Classifier head: (B, hidden) @ (hidden, classes) is far below one vreg /
    # MXU tile -> plain jnp (XLA fuses it for free).
    wfc, bfc = fc_params
    return feat @ wfc + bfc


# ----------------------------------------------------------------------------
if __name__ == "__main__":
    # image_size must reach 9x9 after the 1/2/2-stride stem and then be divided
    # by 3 twice by the two ECO(stride=3) layers -> 36 -> 18 -> 9 -> 3 -> 1.
    B, C0, S = 2, 3, 36
    hidden, num_layers, num_classes = 8, 4, 10

    key = jax.random.PRNGKey(0)
    kx, kp = jax.random.split(key)
    x = jax.random.normal(kx, (B, C0, S, S), jnp.float32)   # NCHW like PyTorch

    cfgs = make_layer_configs(num_layers, hidden)
    params, fc_params = init_params(kp, cfgs, hidden, num_classes)

    fwd = jax.jit(lambda xi, p, fc: cnn_eco_forward(xi, cfgs, p, fc))
    out = jax.block_until_ready(fwd(x, params, fc_params))
    assert out.shape == (B, num_classes), out.shape
    assert jnp.all(jnp.isfinite(out))
    print("KERNEL_OK")
</pallas_src>

<mosaic_0001>
module attributes {stable_mosaic.version = 11 : i64} {
  func.func @_mm_bias_relu_kernel(%arg0: memref<8x27xbf16, #tpu.memory_space<vmem>>, %arg1: memref<27x2592xbf16, #tpu.memory_space<vmem>>, %arg2: memref<8x1xf32, #tpu.memory_space<vmem>>, %arg3: memref<8x2592xbf16, #tpu.memory_space<vmem>>) attributes {dimension_semantics = [], scalar_prefetch = 0 : i64, scratch_operands = 0 : i64, tpu.core_type = #tpu.core_type<tc>} {
    %c0 = arith.constant 0 : index
    %c0_0 = arith.constant 0 : index
    %0 = vector.load %arg0[%c0, %c0_0] : memref<8x27xbf16, #tpu.memory_space<vmem>>, vector<8x27xbf16>
    %c0_1 = arith.constant 0 : index
    %c0_2 = arith.constant 0 : index
    %1 = vector.load %arg1[%c0_1, %c0_2] : memref<27x2592xbf16, #tpu.memory_space<vmem>>, vector<27x2592xbf16>
    %cst = arith.constant dense<0.000000e+00> : vector<8x2592xf32>
    %2 = tpu.matmul %0, %1, %cst {dimension_numbers = #tpu.dot_dimension_numbers<[1], [0], [0], [1], [0, 0, 1, 1], [], []>} : vector<8x27xbf16>, vector<27x2592xbf16>, vector<8x2592xf32> -> vector<8x2592xf32>
    %c0_3 = arith.constant 0 : index
    %c0_4 = arith.constant 0 : index
    %3 = vector.load %arg2[%c0_3, %c0_4] : memref<8x1xf32, #tpu.memory_space<vmem>>, vector<8x1xf32>
    %4 = vector.broadcast %3 : vector<8x1xf32> to vector<8x2592xf32>
    %5 = arith.addf %2, %4 : vector<8x2592xf32>
    %cst_5 = arith.constant 0.000000e+00 : f32
    %6 = vector.broadcast %cst_5 : f32 to vector<8x2592xf32>
    %7 = arith.maximumf %5, %6 : vector<8x2592xf32>
    %8 = arith.truncf %7 : vector<8x2592xf32> to vector<8x2592xbf16>
    %c0_6 = arith.constant 0 : index
    %c0_7 = arith.constant 0 : index
    %9 = vector.load %arg3[%c0_6, %c0_7] : memref<8x2592xbf16, #tpu.memory_space<vmem>>, vector<8x2592xbf16>
    tpu.vector_store %arg3[%c0_6, %c0_7], %8 {strides = array<i32>} : memref<8x2592xbf16, #tpu.memory_space<vmem>>, vector<8x2592xbf16>,
    return
  }
}

module attributes {stable_mosaic.version = 11 : i64} {
  func.func @_mm_bias_relu_kernel(%arg0: memref<8x72xbf16, #tpu.memory_space<vmem>>, %arg1: memref<72x648xbf16, #tpu.memory_space<vmem>>, %arg2: memref<8x1xf32, #tpu.memory_space<vmem>>, %arg3: memref<8x648xbf16, #tpu.memory_space<vmem>>) attributes {dimension_semantics = [], scalar_prefetch = 0 : i64, scratch_operands = 0 : i64, tpu.core_type = #tpu.core_type<tc>} {
    %c0 = arith.constant 0 : index
    %c0_0 = arith.constant 0 : index
    %0 = vector.load %arg0[%c0, %c0_0] : memref<8x72xbf16, #tpu.memory_space<vmem>>, vector<8x72xbf16>
    %c0_1 = arith.constant 0 : index
    %c0_2 = arith.constant 0 : index
    %1 = vector.load %arg1[%c0_1, %c0_2] : memref<72x648xbf16, #tpu.memory_space<vmem>>, vector<72x648xbf16>
    %cst = arith.constant dense<0.000000e+00> : vector<8x648xf32>
    %2 = tpu.matmul %0, %1, %cst {dimension_numbers = #tpu.dot_dimension_numbers<[1], [0], [0], [1], [0, 0, 1, 1], [], []>} : vector<8x72xbf16>, vector<72x648xbf16>, vector<8x648xf32> -> vector<8x648xf32>
    %c0_3 = arith.constant 0 : index
    %c0_4 = arith.constant 0 : index
    %3 = vector.load %arg2[%c0_3, %c0_4] : memref<8x1xf32, #tpu.memory_space<vmem>>, vector<8x1xf32>
    %4 = vector.broadcast %3 : vector<8x1xf32> to vector<8x648xf32>
    %5 = arith.addf %2, %4 : vector<8x648xf32>
    %cst_5 = arith.constant 0.000000e+00 : f32
    %6 = vector.broadcast %cst_5 : f32 to vector<8x648xf32>
    %7 = arith.maximumf %5, %6 : vector<8x648xf32>
    %8 = arith.truncf %7 : vector<8x648xf32> to vector<8x648xbf16>
    %c0_6 = arith.constant 0 : index
    %c0_7 = arith.constant 0 : index
    %9 = vector.load %arg3[%c0_6, %c0_7] : memref<8x648xbf16, #tpu.memory_space<vmem>>, vector<8x648xbf16>
    tpu.vector_store %arg3[%c0_6, %c0_7], %8 {strides = array<i32>} : memref<8x648xbf16, #tpu.memory_space<vmem>>, vector<8x648xbf16>,
    return
  }
}

module attributes {stable_mosaic.version = 11 : i64} {
  func.func @_mm_bias_relu_kernel(%arg0: memref<8x72xbf16, #tpu.memory_space<vmem>>, %arg1: memref<72x162xbf16, #tpu.memory_space<vmem>>, %arg2: memref<8x1xf32, #tpu.memory_space<vmem>>, %arg3: memref<8x162xbf16, #tpu.memory_space<vmem>>) attributes {dimension_semantics = [], scalar_prefetch = 0 : i64, scratch_operands = 0 : i64, tpu.core_type = #tpu.core_type<tc>} {
    %c0 = arith.constant 0 : index
    %c0_0 = arith.constant 0 : index
    %0 = vector.load %arg0[%c0, %c0_0] : memref<8x72xbf16, #tpu.memory_space<vmem>>, vector<8x72xbf16>
    %c0_1 = arith.constant 0 : index
    %c0_2 = arith.constant 0 : index
    %1 = vector.load %arg1[%c0_1, %c0_2] : memref<72x162xbf16, #tpu.memory_space<vmem>>, vector<72x162xbf16>
    %cst = arith.constant dense<0.000000e+00> : vector<8x162xf32>
    %2 = tpu.matmul %0, %1, %cst {dimension_numbers = #tpu.dot_dimension_numbers<[1], [0], [0], [1], [0, 0, 1, 1], [], []>} : vector<8x72xbf16>, vector<72x162xbf16>, vector<8x162xf32> -> vector<8x162xf32>
    %c0_3 = arith.constant 0 : index
    %c0_4 = arith.constant 0 : index
    %3 = vector.load %arg2[%c0_3, %c0_4] : memref<8x1xf32, #tpu.memory_space<vmem>>, vector<8x1xf32>
    %4 = vector.broadcast %3 : vector<8x1xf32> to vector<8x162xf32>
    %5 = arith.addf %2, %4 : vector<8x162xf32>
    %cst_5 = arith.constant 0.000000e+00 : f32
    %6 = vector.broadcast %cst_5 : f32 to vector<8x162xf32>
    %7 = arith.maximumf %5, %6 : vector<8x162xf32>
    %8 = arith.truncf %7 : vector<8x162xf32> to vector<8x162xbf16>
    %c0_6 = arith.constant 0 : index
    %c0_7 = arith.constant 0 : index
    %9 = vector.load %arg3[%c0_6, %c0_7] : memref<8x162xbf16, #tpu.memory_space<vmem>>, vector<8x162xbf16>
    tpu.vector_store %arg3[%c0_6, %c0_7], %8 {strides = array<i32>} : memref<8x162xbf16, #tpu.memory_space<vmem>>, vector<8x162xbf16>,
    return
  }
}

</mosaic_0001>

<llo_original>
// kernel: _lambda_.4
$region0: #{_lambda_.4}
  #allocation0 [shape = 'u32[]', space=smem, size = 0x4, offset = 0x4, fixed_abs, tag = 'smem constant byte address 0x4 - core index']
  #allocation1 [shape = 'u32[72,128]{1,0:T(1,128)}', space=vmem, size = 0x9000, scoped, tag = 'internal scratch']
  %s0 = inlined_call_operand.vmem [shape: bf16[8,27], index: 0, kind: input, shape index: {}]
  %s1 = inlined_call_operand.vmem [shape: bf16[27,2592], index: 1, kind: input, shape index: {}]
  %s2 = inlined_call_operand.vmem [shape: f32[8,1], index: 2, kind: input, shape index: {}]
  %s3 = inlined_call_operand.vmem [shape: bf16[8,2592], index: 3, kind: output, shape index: {}]
  %s4 = sld [smem:[#allocation0]]
  $region22: #{_lambda_.4} parent=0
    _
  %s6 = ssub.s32 1, %s4
  %s7 = scalar_select 0, %s6, %s4
  // Predicated region
  $region2: #{_lambda_.4} parent=0 // pred_check
    _
  $region3: #{_lambda_.4} parent=0 // pred_check_branch
    %9 = sbr.rel (0) target = $region5
  $region4: #{_lambda_.4} parent=0 // pred_region
    _
  $region5: #{_lambda_.4} parent=0 // pred_fallthru
    _
  // Predicated region
  $region6: #{_lambda_.4} parent=0 // pred_check
    _
  $region7: #{_lambda_.4} parent=0 // pred_check_branch
    %11 = sbr.rel (0) target = $region9
  $region8: #{_lambda_.4} parent=0 // pred_region
    _
  $region9: #{_lambda_.4} parent=0 // pred_fallthru
    _
  // Predicated region
  $region10: #{_lambda_.4} parent=0 // pred_check
    _
  $region11: #{_lambda_.4} parent=0 // pred_check_branch
    %13 = sbr.rel (0) target = $region13
  $region12: #{_lambda_.4} parent=0 // pred_region
    _
  $region13: #{_lambda_.4} parent=0 // pred_fallthru
    _
  %v15 = vld [vmem:[%s0] sm:$0xf]
  %v16 = vld [vmem:[%s1] sm:$0xff]
  %v17 = vld [vmem:[%s1 + $0x8] sm:$0xff]
  %v18 = vld [vmem:[%s1 + $0x10] sm:$0xff]
  %v19 = vld [vmem:[%s1 + $0x18] sm:$0xff]
  %v20 = vld [vmem:[%s1 + $0x20] sm:$0xff]
  %v21 = vld [vmem:[%s1 + $0x28] sm:$0xff]
  %v22 = vld [vmem:[%s1 + $0x30] sm:$0xff]
  %v23 = vld [vmem:[%s1 + $0x38] sm:$0xff]
  %v24 = vld [vmem:[%s1 + $0x40] sm:$0xff]
  %v25 = vld [vmem:[%s1 + $0x48] sm:$0xff]
  %v26 = vld [vmem:[%s1 + $0x50] sm:$0xf]
  %v27 = vld [vmem:[%s1 + $0x54] sm:$0xff]
  %v28 = vld [vmem:[%s1 + $0x5c] sm:$0xff]
  %v29 = vld [vmem:[%s1 + $0x64] sm:$0xff]
  %v30 = vld [vmem:[%s1 + $0x6c] sm:$0xff]
  %v31 = vld [vmem:[%s1 + $0x74] sm:$0xff]
  %v32 = vld [vmem:[%s1 + $0x7c] sm:$0xff]
  %v33 = vld [vmem:[%s1 + $0x84] sm:$0xff]
  %v34 = vld [vmem:[%s1 + $0x8c] sm:$0xff]
  %v35 = vld [vmem:[%s1 + $0x94] sm:$0xff]
  %v36 = vld [vmem:[%s1 + $0x9c] sm:$0xff]
  %v37 = vld [vmem:[%s1 + $0xa4] sm:$0xf]
  %v38 = vld [vmem:[%s1 + $0xa8] sm:$0xff]
  %v39 = vld [vmem:[%s1 + $0xb0] sm:$0xff]
  %v40 = vld [vmem:[%s1 + $0xb8] sm:$0xff]
  %v41 = vld [vmem:[%s1 + $0xc0] sm:$0xff]
  %v42 = vld [vmem:[%s1 + $0xc8] sm:$0xff]
  %v43 = vld [vmem:[%s1 + $0xd0] sm:$0xff]
  %v44 = vld [vmem:[%s1 + $0xd8] sm:$0xff]
  %v45 = vld [vmem:[%s1 + $0xe0] sm:$0xff]
  %v46 = vld [vmem:[%s1 + $0xe8] sm:$0xff]
  %v47 = vld [vmem:[%s1 + $0xf0] sm:$0xff]
  %v48 = vld [vmem:[%s1 + $0xf8] sm:$0xf]
  %v49 = vld [vmem:[%s1 + $0xfc] sm:$0x33]
  %v50 = vld [vmem:[%s1 + $0x104] sm:$0x33]
  %v51 = vld [vmem:[%s1 + $0x10c] sm:$0x33]
  %v52 = vld [vmem:[%s1 + $0x114] sm:$0x33]
  %v53 = vld [vmem:[%s1 + $0x11c] sm:$0x33]
  %v54 = vld [vmem:[%s1 + $0x124] sm:$0x33]
  %v55 = vld [vmem:[%s1 + $0x12c] sm:$0x33]
  %v56 = vld [vmem:[%s1 + $0x134] sm:$0x33]
  %v57 = vld [vmem:[%s1 + $0x13c] sm:$0x33]
  %v58 = vld [vmem:[%s1 + $0x144] sm:$0x33]
  %v59 = vld [vmem:[%s1 + $0x14c] sm:$0x3]
  %v60 = vld [vmem:[%s2] sm:$0xff]
  %62 = vset.pattern.permute.xlu0 0
  %63 = vperm.xlu0 %62, %v60
  %v64 = vpop.permute.xlu0 %63
  %v110 = vunpack.c.l.b16 %v16
  %v111 = vunpack.c.h.b16 %v16
  %v112 = vunpack.c.l.b16 %v17
  %v113 = vunpack.c.h.b16 %v17
  %v114 = vunpack.c.l.b16 %v18
  %v115 = vunpack.c.h.b16 %v18
  %v116 = vunpack.c.l.b16 %v19
  %v117 = vunpack.c.h.b16 %v19
  %v118 = vunpack.c.l.b16 %v20
  %v119 = vunpack.c.h.b16 %v20
  %v120 = vunpack.c.l.b16 %v21
  %v121 = vunpack.c.h.b16 %v21
  %v122 = vunpack.c.l.b16 %v22
  %v123 = vunpack.c.h.b16 %v22
  %v124 = vunpack.c.l.b16 %v23
  %v125 = vunpack.c.h.b16 %v23
  %v126 = vunpack.c.l.b16 %v24
  %v127 = vunpack.c.h.b16 %v24
  %v128 = vunpack.c.l.b16 %v25
  %v129 = vunpack.c.h.b16 %v25
  %v130 = vunpack.c.l.b16 %v26
  %v131 = vunpack.c.l.b16 %v27
  %v132 = vunpack.c.h.b16 %v27
  %v133 = vunpack.c.l.b16 %v28
  %v134 = vunpack.c.h.b16 %v28
  %v135 = vunpack.c.l.b16 %v29
  %v136 = vunpack.c.h.b16 %v29
  %v137 = vunpack.c.l.b16 %v30
  %v138 = vunpack.c.h.b16 %v30
  %v139 = vunpack.c.l.b16 %v31
  %v140 = vunpack.c.h.b16 %v31
  %v141 = vunpack.c.l.b16 %v32
  %v142 = vunpack.c.h.b16 %v32
  %v143 = vunpack.c.l.b16 %v33
  %v144 = vunpack.c.h.b16 %v33
  %v145 = vunpack.c.l.b16 %v34
  %v146 = vunpack.c.h.b16 %v34
  %v147 = vunpack.c.l.b16 %v35
  %v148 = vunpack.c.h.b16 %v35
  %v149 = vunpack.c.l.b16 %v36
  %v150 = vunpack.c.h.b16 %v36
  %v151 = vunpack.c.l.b16 %v37
  %v152 = vunpack.c.l.b16 %v38
  %v153 = vunpack.c.h.b16 %v38
  %v154 = vunpack.c.l.b16 %v39
  %v155 = vunpack.c.h.b16 %v39
  %v156 = vunpack.c.l.b16 %v40
  %v157 = vunpack.c.h.b16 %v40
  %v158 = vunpack.c.l.b16 %v41
  %v159 = vunpack.c.h.b16 %v41
  %v160 = vunpack.c.l.b16 %v42
  %v161 = vunpack.c.h.b16 %v42
  %v162 = vunpack.c.l.b16 %v43
  %v163 = vunpack.c.h.b16 %v43
  %v164 = vunpack.c.l.b16 %v44
  %v165 = vunpack.c.h.b16 %v44
  %v166 = vunpack.c.l.b16 %v45
  %v167 = vunpack.c.h.b16 %v45
  %v168 = vunpack.c.l.b16 %v46
  %v169 = vunpack.c.h.b16 %v46
  %v170 = vunpack.c.l.b16 %v47
  %v171 = vunpack.c.h.b16 %v47
  %v172 = vunpack.c.l.b16 %v48
  %v173 = vunpack.c.l.b16 %v49
  %v174 = vunpack.c.h.b16 %v49
  %v175 = vunpack.c.l.b16 %v50
  %v176 = vunpack.c.h.b16 %v50
  %v177 = vunpack.c.l.b16 %v51
  %v178 = vunpack.c.h.b16 %v51
  %v179 = vunpack.c.l.b16 %v52
  %v180 = vunpack.c.h.b16 %v52
  %v181 = vunpack.c.l.b16 %v53
  %v182 = vunpack.c.h.b16 %v53
  %v183 = vunpack.c.l.b16 %v54
  %v184 = vunpack.c.h.b16 %v54
  %v185 = vunpack.c.l.b16 %v55
  %v186 = vunpack.c.h.b16 %v55
  %v187 = vunpack.c.l.b16 %v56
  %v188 = vunpack.c.h.b16 %v56
  %v189 = vunpack.c.l.b16 %v57
  %v190 = vunpack.c.h.b16 %v57
  %v191 = vunpack.c.l.b16 %v58
  %v192 = vunpack.c.h.b16 %v58
  %v193 = vunpack.c.l.b16 %v59
  %v194 = vpack.c.b16 %v131, %v110
  %v195 = vpack.c.b16 %v132, %v111
  %v196 = vpack.c.b16 %v133, %v112
  %v197 = vpack.c.b16 %v134, %v113
  %v198 = vpack.c.b16 %v135, %v114
  %v199 = vpack.c.b16 %v136, %v115
  %v200 = vpack.c.b16 %v137, %v116
  %v201 = vpack.c.b16 %v138, %v117
  %v202 = vpack.c.b16 %v139, %v118
  %v203 = vpack.c.b16 %v140, %v119
  %v204 = vpack.c.b16 %v141, %v120
  %v205 = vpack.c.b16 %v142, %v121
  %v206 = vpack.c.b16 %v143, %v122
  %v207 = vpack.c.b16 %v144, %v123
  %v208 = vpack.c.b16 %v145, %v124
  %v209 = vpack.c.b16 %v146, %v125
  %v210 = vpack.c.b16 %v147, %v126
  %v211 = vpack.c.b16 %v148, %v127
  %v212 = vpack.c.b16 %v149, %v128
  %v213 = vpack.c.b16 %v150, %v129
  %v214 = vpack.c.b16 %v151, %v130
  %v215 = vpack.c.b16 %v173, %v152
  %v216 = vpack.c.b16 %v174, %v153
  %v217 = vpack.c.b16 %v175, %v154
  %v218 = vpack.c.b16 %v176, %v155
  %v219 = vpack.c.b16 %v177, %v156
  %v220 = vpack.c.b16 %v178, %v157
  %v221 = vpack.c.b16 %v179, %v158
  %v222 = vpack.c.b16 %v180, %v159
  %v223 = vpack.c.b16 %v181, %v160
  %v224 = vpack.c.b16 %v182, %v161
  %v225 = vpack.c.b16 %v183, %v162
  %v226 = vpack.c.b16 %v184, %v163
  %v227 = vpack.c.b16 %v185, %v164
  %v228 = vpack.c.b16 %v186, %v165
  %v229 = vpack.c.b16 %v187, %v166
  %v230 = vpack.c.b16 %v188, %v167
  %v231 = vpack.c.b16 %v189, %v168
  %v232 = vpack.c.b16 %v190, %v169
  %v233 = vpack.c.b16 %v191, %v170
  %v234 = vpack.c.b16 %v192, %v171
  %v235 = vpack.c.b16 %v193, %v172
  %vm257 = vcmask 220160
  %v259 = vsel %vm257, %v15, 0
  %vm261 = vcmask 1044480
  %vm262 = vcmask 1045504
  %v263 = vsel %vm261, 4294967295, 65535
  %v264 = vsel %vm262, %v263, 0
  %v266 = vand.u32 %v215, %v264
  %v269 = vand.u32 %v216, %v264
  %v272 = vand.u32 %v217, %v264
  %v275 = vand.u32 %v218, %v264
  %v278 = vand.u32 %v219, %v264
  %v281 = vand.u32 %v220, %v264
  %v284 = vand.u32 %v221, %v264
  %v287 = vand.u32 %v222, %v264
  %v290 = vand.u32 %v223, %v264
  %v293 = vand.u32 %v224, %v264
  %v296 = vand.u32 %v225, %v264
  %v299 = vand.u32 %v226, %v264
  %v302 = vand.u32 %v227, %v264
  %v305 = vand.u32 %v228, %v264
  %v308 = vand.u32 %v229, %v264
  %v311 = vand.u32 %v230, %v264
  %v314 = vand.u32 %v231, %v264
  %v317 = vand.u32 %v232, %v264
  %v320 = vand.u32 %v233, %v264
  %v323 = vand.u32 %v234, %v264
  %v326 = vand.u32 %v235, %v264
  %328 = vmatpush.bf16.msra.mxu0 0
  %329 = vmatpush.bf16.msra.mxu0 0
  %330 = vmatpush.bf16.msra.mxu0 0
  %331 = vmatpush.bf16.msra.mxu0 0
  %332 = vmatpush.bf16.msra.mxu0 0
  %333 = vmatpush.bf16.msra.mxu0 0
  %334 = vmatpush.bf16.msra.mxu0 %v266
  %335 = vmatpush.bf16.msra.mxu0 %v194
  %336 = vmatmul.bf16.gmra.mxu0 %v259
  %v337 = vpop.f32.mrf.mxu0
  %v338 = vadd.f32 %v64, %v337
  %v339 = vpop.f32.mrf.mxu0
  %340 = vdwg.mxu0
  %341 = vmatpush.bf16.msra.mxu0 0
  %342 = vmatpush.bf16.msra.mxu0 0
  %343 = vmatpush.bf16.msra.mxu0 0
  %344 = vmatpush.bf16.msra.mxu0 0
  %345 = vmatpush.bf16.msra.mxu0 0
  %346 = vmatpush.bf16.msra.mxu0 0
  %347 = vmatpush.bf16.msra.mxu0 %v269
  %348 = vmatpush.bf16.msra.mxu0 %v195
  %349 = vmatmul.bf16.gmra.mxu0 %v259
  %v350 = vpop.f32.mrf.mxu0
  %v351 = vadd.f32 %v64, %v350
  %v352 = vpop.f32.mrf.mxu0
  %353 = vdwg.mxu0
  %354 = vmatpush.bf16.msra.mxu0 0
  %355 = vmatpush.bf16.msra.mxu0 0
  %356 = vmatpush.bf16.msra.mxu0 0
  %357 = vmatpush.bf16.msra.mxu0 0
  %358 = vmatpush.bf16.msra.mxu0 0
  %359 = vmatpush.bf16.msra.mxu0 0
  %360 = vmatpush.bf16.msra.mxu0 %v272
  %361 = vmatpush.bf16.msra.mxu0 %v196
  %362 = vmatmul.bf16.gmra.mxu0 %v259
  %v363 = vpop.f32.mrf.mxu0
  %v364 = vadd.f32 %v64, %v363
  %v365 = vpop.f32.mrf.mxu0
  %366 = vdwg.mxu0
  %367 = vmatpush.bf16.msra.mxu0 0
  %368 = vmatpush.bf16.msra.mxu0 0
  %369 = vmatpush.bf16.msra.mxu0 0
  %370 = vmatpush.bf16.msra.mxu0 0
  %371 = vmatpush.bf16.msra.mxu0 0
  %372 = vmatpush.bf16.msra.mxu0 0
  %373 = vmatpush.bf16.msra.mxu0 %v275
  %374 = vmatpush.bf16.msra.mxu0 %v197
  %375 = vmatmul.bf16.gmra.mxu0 %v259
  %v376 = vpop.f32.mrf.mxu0
  %v377 = vadd.f32 %v64, %v376
  %v378 = vpop.f32.mrf.mxu0
  %379 = vdwg.mxu0
  %380 = vmatpush.bf16.msra.mxu0 0
  %381 = vmatpush.bf16.msra.mxu0 0
  %382 = vmatpush.bf16.msra.mxu0 0
  %383 = vmatpush.bf16.msra.mxu0 0
  %384 = vmatpush.bf16.msra.mxu0 0
  %385 = vmatpush.bf16.msra.mxu0 0
  %386 = vmatpush.bf16.msra.mxu0 %v278
  %387 = vmatpush.bf16.msra.mxu0 %v198
  %388 = vmatmul.bf16.gmra.mxu0 %v259
  %v389 = vpop.f32.mrf.mxu0
  %v390 = vadd.f32 %v64, %v389
  %v391 = vpop.f32.mrf.mxu0
  %392 = vdwg.mxu0
  %393 = vmatpush.bf16.msra.mxu0 0
  %394 = vmatpush.bf16.msra.mxu0 0
  %395 = vmatpush.bf16.msra.mxu0 0
  %396 = vmatpush.bf16.msra.mxu0 0
  %397 = vmatpush.bf16.msra.mxu0 0
  %398 = vmatpush.bf16.msra.mxu0 0
  %399 = vmatpush.bf16.msra.mxu0 %v281
  %400 = vmatpush.bf16.msra.mxu0 %v199
  %401 = vmatmul.bf16.gmra.mxu0 %v259
  %v402 = vpop.f32.mrf.mxu0
  %v403 = vadd.f32 %v64, %v402
  %v404 = vpop.f32.mrf.mxu0
  %405 = vdwg.mxu0
  %406 = vmatpush.bf16.msra.mxu0 0
  %407 = vmatpush.bf16.msra.mxu0 0
  %408 = vmatpush.bf16.msra.mxu0 0
  %409 = vmatpush.bf16.msra.mxu0 0
  %410 = vmatpush.bf16.msra.mxu0 0
  %411 = vmatpush.bf16.msra.mxu0 0
  %412 = vmatpush.bf16.msra.mxu0 %v284
  %413 = vmatpush.bf16.msra.mxu0 %v200
  %414 = vmatmul.bf16.gmra.mxu0 %v259
  %v415 = vpop.f32.mrf.mxu0
  %v416 = vadd.f32 %v64, %v415
  %v417 = vpop.f32.mrf.mxu0
  %418 = vdwg.mxu0
  %419 = vmatpush.bf16.msra.mxu0 0
  %420 = vmatpush.bf16.msra.mxu0 0
  %421 = vmatpush.bf16.msra.mxu0 0
  %422 = vmatpush.bf16.msra.mxu0 0
  %423 = vmatpush.bf16.msra.mxu0 0
  %424 = vmatpush.bf16.msra.mxu0 0
  %425 = vmatpush.bf16.msra.mxu0 %v287
  %426 = vmatpush.bf16.msra.mxu0 %v201
  %427 = vmatmul.bf16.gmra.mxu0 %v259
  %v428 = vpop.f32.mrf.mxu0
  %v429 = vadd.f32 %v64, %v428
  %v430 = vpop.f32.mrf.mxu0
  %431 = vdwg.mxu0
  %432 = vmatpush.bf16.msra.mxu0 0
  %433 = vmatpush.bf16.msra.mxu0 0
  %434 = vmatpush.bf16.msra.mxu0 0
  %435 = vmatpush.bf16.msra.mxu0 0
  %436 = vmatpush.bf16.msra.mxu0 0
  %437 = vmatpush.bf16.msra.mxu0 0
  %438 = vmatpush.bf16.msra.mxu0 %v290
  %439 = vmatpush.bf16.msra.mxu0 %v202
  %440 = vmatmul.bf16.gmra.mxu0 %v259
  %v441 = vpop.f32.mrf.mxu0
  %v442 = vadd.f32 %v64, %v441
  %v443 = vpop.f32.mrf.mxu0
  %444 = vdwg.mxu0
  %445 = vmatpush.bf16.msra.mxu0 0
  %446 = vmatpush.bf16.msra.mxu0 0
  %447 = vmatpush.bf16.msra.mxu0 0
  %448 = vmatpush.bf16.msra.mxu0 0
  %449 = vmatpush.bf16.msra.mxu0 0
  %450 = vmatpush.bf16.msra.mxu0 0
  %451 = vmatpush.bf16.msra.mxu0 %v293
  %452 = vmatpush.bf16.msra.mxu0 %v203
  %453 = vmatmul.bf16.gmra.mxu0 %v259
  %v454 = vpop.f32.mrf.mxu0
  %v455 = vadd.f32 %v64, %v454
  %v456 = vpop.f32.mrf.mxu0
  %457 = vdwg.mxu0
  %458 = vmatpush.bf16.msra.mxu0 0
  %459 = vmatpush.bf16.msra.mxu0 0
  %460 = vmatpush.bf16.msra.mxu0 0
  %461 = vmatpush.bf16.msra.mxu0 0
  %462 = vmatpush.bf16.msra.mxu0 0
  %463 = vmatpush.bf16.msra.mxu0 0
  %464 = vmatpush.bf16.msra.mxu0 %v296
  %465 = vmatpush.bf16.msra.mxu0 %v204
  %466 = vmatmul.bf16.gmra.mxu0 %v259
  %v467 = vpop.f32.mrf.mxu0
  %v468 = vadd.f32 %v64, %v467
  %v469 = vpop.f32.mrf.mxu0
  %470 = vdwg.mxu0
  %471 = vmatpush.bf16.msra.mxu0 0
  %472 = vmatpush.bf16.msra.mxu0 0
  %473 = vmatpush.bf16.msra.mxu0 0
  %474 = vmatpush.bf16.msra.mxu0 0
  %475 = vmatpush.bf16.msra.mxu0 0
  %476 = vmatpush.bf16.msra.mxu0 0
  %477 = vmatpush.bf16.msra.mxu0 %v299
  %478 = vmatpush.bf16.msra.mxu0 %v205
  %479 = vmatmul.bf16.gmra.mxu0 %v259
  %v480 = vpop.f32.mrf.mxu0
  %v481 = vadd.f32 %v64, %v480
  %v482 = vpop.f32.mrf.mxu0
  %483 = vdwg.mxu0
  %484 = vmatpush.bf16.msra.mxu0 0
  %485 = vmatpush.bf16.msra.mxu0 0
  %486 = vmatpush.bf16.msra.mxu0 0
  %487 = vmatpush.bf16.msra.mxu0 0
  %488 = vmatpush.bf16.msra.mxu0 0
  %489 = vmatpush.bf16.msra.mxu0 0
  %490 = vmatpush.bf16.msra.mxu0 %v302
  %491 = vmatpush.bf16.msra.mxu0 %v206
  %492 = vmatmul.bf16.gmra.mxu0 %v259
  %v493 = vpop.f32.mrf.mxu0
  %v494 = vadd.f32 %v64, %v493
  %v495 = vpop.f32.mrf.mxu0
  %496 = vdwg.mxu0
  %497 = vmatpush.bf16.msra.mxu0 0
  %498 = vmatpush.bf16.msra.mxu0 0
  %499 = vmatpush.bf16.msra.mxu0 0
  %500 = vmatpush.bf16.msra.mxu0 0
  %501 = vmatpush.bf16.msra.mxu0 0
  %502 = vmatpush.bf16.msra.mxu0 0
  %503 = vmatpush.bf16.msra.mxu0 %v305
  %504 = vmatpush.bf16.msra.mxu0 %v207
  %505 = vmatmul.bf16.gmra.mxu0 %v259
  %v506 = vpop.f32.mrf.mxu0
  %v507 = vadd.f32 %v64, %v506
  %v508 = vpop.f32.mrf.mxu0
  %509 = vdwg.mxu0
  %510 = vmatpush.bf16.msra.mxu0 0
  %511 = vmatpush.bf16.msra.mxu0 0
  %512 = vmatpush.bf16.msra.mxu0 0
  %513 = vmatpush.bf16.msra.mxu0 0
  %514 = vmatpush.bf16.msra.mxu0 0
  %515 = vmatpush.bf16.msra.mxu0 0
  %516 = vmatpush.bf16.msra.mxu0 %v308
  %517 = vmatpush.bf16.msra.mxu0 %v208
  %518 = vmatmul.bf16.gmra.mxu0 %v259
  %v519 = vpop.f32.mrf.mxu0
  %v520 = vadd.f32 %v64, %v519
  %v521 = vpop.f32.mrf.mxu0
  %522 = vdwg.mxu0
  %523 = vmatpush.bf16.msra.mxu0 0
  %524 = vmatpush.bf16.msra.mxu0 0
  %525 = vmatpush.bf16.msra.mxu0 0
  %526 = vmatpush.bf16.msra.mxu0 0
  %527 = vmatpush.bf16.msra.mxu0 0
  %528 = vmatpush.bf16.msra.mxu0 0
  %529 = vmatpush.bf16.msra.mxu0 %v311
  %530 = vmatpush.bf16.msra.mxu0 %v209
  %531 = vmatmul.bf16.gmra.mxu0 %v259
  %v532 = vpop.f32.mrf.mxu0
  %v533 = vadd.f32 %v64, %v532
  %v534 = vpop.f32.mrf.mxu0
  %535 = vdwg.mxu0
  %536 = vmatpush.bf16.msra.mxu0 0
  %537 = vmatpush.bf16.msra.mxu0 0
  %538 = vmatpush.bf16.msra.mxu0 0
  %539 = vmatpush.bf16.msra.mxu0 0
  %540 = vmatpush.bf16.msra.mxu0 0
  %541 = vmatpush.bf16.msra.mxu0 0
  %542 = vmatpush.bf16.msra.mxu0 %v314
  %543 = vmatpush.bf16.msra.mxu0 %v210
  %544 = vmatmul.bf16.gmra.mxu0 %v259
  %v545 = vpop.f32.mrf.mxu0
  %v546 = vadd.f32 %v64, %v545
  %v547 = vpop.f32.mrf.mxu0
  %548 = vdwg.mxu0
  %549 = vmatpush.bf16.msra.mxu0 0
  %550 = vmatpush.bf16.msra.mxu0 0
  %551 = vmatpush.bf16.msra.mxu0 0
  %552 = vmatpush.bf16.msra.mxu0 0
  %553 = vmatpush.bf16.msra.mxu0 0
  %554 = vmatpush.bf16.msra.mxu0 0
  %555 = vmatpush.bf16.msra.mxu0 %v317
  %556 = vmatpush.bf16.msra.mxu0 %v211
  %557 = vmatmul.bf16.gmra.mxu0 %v259
  %v558 = vpop.f32.mrf.mxu0
  %v559 = vadd.f32 %v64, %v558
  %v560 = vpop.f32.mrf.mxu0
  %561 = vdwg.mxu0
  %562 = vmatpush.bf16.msra.mxu0 0
  %563 = vmatpush.bf16.msra.mxu0 0
  %564 = vmatpush.bf16.msra.mxu0 0
  %565 = vmatpush.bf16.msra.mxu0 0
  %566 = vmatpush.bf16.msra.mxu0 0
  %567 = vmatpush.bf16.msra.mxu0 0
  %568 = vmatpush.bf16.msra.mxu0 %v320
  %569 = vmatpush.bf16.msra.mxu0 %v212
  %570 = vmatmul.bf16.gmra.mxu0 %v259
  %v571 = vpop.f32.mrf.mxu0
  %v572 = vadd.f32 %v64, %v571
  %v573 = vpop.f32.mrf.mxu0
  %574 = vdwg.mxu0
  %575 = vmatpush.bf16.msra.mxu0 0
  %576 = vmatpush.bf16.msra.mxu0 0
  %577 = vmatpush.bf16.msra.mxu0 0
  %578 = vmatpush.bf16.msra.mxu0 0
  %579 = vmatpush.bf16.msra.mxu0 0
  %580 = vmatpush.bf16.msra.mxu0 0
  %581 = vmatpush.bf16.msra.mxu0 %v323
  %582 = vmatpush.bf16.msra.mxu0 %v213
  %583 = vmatmul.bf16.gmra.mxu0 %v259
  %v584 = vpop.f32.mrf.mxu0
  %v585 = vadd.f32 %v64, %v584
  %v586 = vpop.f32.mrf.mxu0
  %587 = vdwg.mxu0
  %588 = vmatpush.bf16.msra.mxu0 0
  %589 = vmatpush.bf16.msra.mxu0 0
  %590 = vmatpush.bf16.msra.mxu0 0
  %591 = vmatpush.bf16.msra.mxu0 0
  %592 = vmatpush.bf16.msra.mxu0 0
  %593 = vmatpush.bf16.msra.mxu0 0
  %594 = vmatpush.bf16.msra.mxu0 %v326
  %595 = vmatpush.bf16.msra.mxu0 %v214
  %596 = vmatmul.bf16.gmra.mxu0 %v259
  %v597 = vpop.f32.mrf.mxu0
  %v598 = vadd.f32 %v64, %v597
  %v599 = vpop.f32.mrf.mxu0
  %600 = vdwg.mxu0
  %v601 = vmax.f32 %v338, 0.0
  %v602 = vmax.f32 %v351, 0.0
  %v603 = vmax.f32 %v364, 0.0
  %v604 = vmax.f32 %v377, 0.0
  %v605 = vmax.f32 %v390, 0.0
  %v606 = vmax.f32 %v403, 0.0
  %v607 = vmax.f32 %v416, 0.0
  %v608 = vmax.f32 %v429, 0.0
  %v609 = vmax.f32 %v442, 0.0
  %v610 = vmax.f32 %v455, 0.0
  %v611 = vmax.f32 %v468, 0.0
  %v612 = vmax.f32 %v481, 0.0
  %v613 = vmax.f32 %v494, 0.0
  %v614 = vmax.f32 %v507, 0.0
  %v615 = vmax.f32 %v520, 0.0
  %v616 = vmax.f32 %v533, 0.0
  %v617 = vmax.f32 %v546, 0.0
  %v618 = vmax.f32 %v559, 0.0
  %v619 = vmax.f32 %v572, 0.0
  %v620 = vmax.f32 %v585, 0.0
  %v621 = vmax.f32 %v598, 0.0
  %v622 = vpack.c.bf16 %v602, %v601
  %v623 = vpack.c.bf16 %v604, %v603
  %v624 = vpack.c.bf16 %v606, %v605
  %v625 = vpack.c.bf16 %v608, %v607
  %v626 = vpack.c.bf16 %v610, %v609
  %v627 = vpack.c.bf16 %v612, %v611
  %v628 = vpack.c.bf16 %v614, %v613
  %v629 = vpack.c.bf16 %v616, %v615
  %v630 = vpack.c.bf16 %v618, %v617
  %v631 = vpack.c.bf16 %v620, %v619
  %v632 = vpack.c.bf16 %v621, %v621
  %633 = vst [vmem:[%s3] sm:$0xff] %v622
  %634 = vst [vmem:[%s3 + $0x8] sm:$0xff] %v623
  %635 = vst [vmem:[%s3 + $0x10] sm:$0xff] %v624
  %636 = vst [vmem:[%s3 + $0x18] sm:$0xff] %v625
  %637 = vst [vmem:[%s3 + $0x20] sm:$0xff] %v626
  %638 = vst [vmem:[%s3 + $0x28] sm:$0xff] %v627
  %639 = vst [vmem:[%s3 + $0x30] sm:$0xff] %v628
  %640 = vst [vmem:[%s3 + $0x38] sm:$0xff] %v629
  %641 = vst [vmem:[%s3 + $0x40] sm:$0xff] %v630
  %642 = vst [vmem:[%s3 + $0x48] sm:$0xff] %v631
  %vm643 = vcmask 257024
  %644 = vst.msk [vmem:[%s3 + $0x50] sm:$0xf] %vm643, %v632
  // Predicated region
  $region14: #{_lambda_.4} parent=0 // pred_check
    _
  $region15: #{_lambda_.4} parent=0 // pred_check_branch
    %646 = sbr.rel (0) target = $region17
  $region16: #{_lambda_.4} parent=0 // pred_region
    _
  $region17: #{_lambda_.4} parent=0 // pred_fallthru
    _
  // Predicated region
  $region18: #{_lambda_.4} parent=0 // pred_check
    _
  $region19: #{_lambda_.4} parent=0 // pred_check_branch
    %648 = sbr.rel (0) target = $region21
  $region20: #{_lambda_.4} parent=0 // pred_region
    _
  $region21: #{_lambda_.4} parent=0 // pred_fallthru
    _

// kernel: _lambda_.5
$region0: #{_lambda_.5}
  #allocation0 [shape = 'u32[]', space=smem, size = 0x4, offset = 0x4, fixed_abs, tag = 'smem constant byte address 0x4 - core index']
  #allocation1 [shape = 'u32[72,128]{1,0:T(1,128)}', space=vmem, size = 0x9000, scoped, tag = 'internal scratch']
  %s0 = inlined_call_operand.vmem [shape: bf16[8,72], index: 0, kind: input, shape index: {}]
  %s1 = inlined_call_operand.vmem [shape: bf16[72,648], index: 1, kind: input, shape index: {}]
  %s2 = inlined_call_operand.vmem [shape: f32[8,1], index: 2, kind: input, shape index: {}]
  %s3 = inlined_call_operand.vmem [shape: bf16[8,648], index: 3, kind: output, shape index: {}]
  %s4 = sld [smem:[#allocation0]]
  $region22: #{_lambda_.5} parent=0
    _
  %s6 = ssub.s32 1, %s4
  %s7 = scalar_select 0, %s6, %s4
  // Predicated region
  $region2: #{_lambda_.5} parent=0 // pred_check
    _
  $region3: #{_lambda_.5} parent=0 // pred_check_branch
    %9 = sbr.rel (0) target = $region5
  $region4: #{_lambda_.5} parent=0 // pred_region
    _
  $region5: #{_lambda_.5} parent=0 // pred_fallthru
    _
  // Predicated region
  $region6: #{_lambda_.5} parent=0 // pred_check
    _
  $region7: #{_lambda_.5} parent=0 // pred_check_branch
    %11 = sbr.rel (0) target = $region9
  $region8: #{_lambda_.5} parent=0 // pred_region
    _
  $region9: #{_lambda_.5} parent=0 // pred_fallthru
    _
  // Predicated region
  $region10: #{_lambda_.5} parent=0 // pred_check
    _
  $region11: #{_lambda_.5} parent=0 // pred_check_branch
    %13 = sbr.rel (0) target = $region13
  $region12: #{_lambda_.5} parent=0 // pred_region
    _
  $region13: #{_lambda_.5} parent=0 // pred_fallthru
    _
  %v15 = vld [vmem:[%s0] sm:$0xf]
  %v16 = vld [vmem:[%s1] sm:$0xff]
  %v17 = vld [vmem:[%s1 + $0x8] sm:$0xff]
  %v18 = vld [vmem:[%s1 + $0x10] sm:$0xff]
  %v19 = vld [vmem:[%s1 + $0x18] sm:$0xff]
  %v20 = vld [vmem:[%s1 + $0x20] sm:$0xff]
  %v21 = vld [vmem:[%s1 + $0x28] sm:$0xff]
  %v22 = vld [vmem:[%s1 + $0x30] sm:$0xff]
  %v23 = vld [vmem:[%s1 + $0x38] sm:$0xff]
  %v24 = vld [vmem:[%s1 + $0x40] sm:$0xff]
  %v25 = vld [vmem:[%s1 + $0x48] sm:$0xff]
  %v26 = vld [vmem:[%s1 + $0x50] sm:$0xff]
  %v27 = vld [vmem:[%s1 + $0x58] sm:$0xff]
  %v28 = vld [vmem:[%s1 + $0x60] sm:$0xff]
  %v29 = vld [vmem:[%s1 + $0x68] sm:$0xff]
  %v30 = vld [vmem:[%s1 + $0x70] sm:$0xff]
  %v31 = vld [vmem:[%s1 + $0x78] sm:$0xff]
  %v32 = vld [vmem:[%s1 + $0x80] sm:$0xff]
  %v33 = vld [vmem:[%s1 + $0x88] sm:$0xff]
  %v34 = vld [vmem:[%s1 + $0x90] sm:$0xff]
  %v35 = vld [vmem:[%s1 + $0x98] sm:$0xff]
  %v36 = vld [vmem:[%s1 + $0xa0] sm:$0xff]
  %v37 = vld [vmem:[%s1 + $0xa8] sm:$0xff]
  %v38 = vld [vmem:[%s1 + $0xb0] sm:$0xff]
  %v39 = vld [vmem:[%s1 + $0xb8] sm:$0xff]
  %v40 = vld [vmem:[%s1 + $0xc0] sm:$0xff]
  %v41 = vld [vmem:[%s1 + $0xc8] sm:$0xff]
  %v42 = vld [vmem:[%s1 + $0xd0] sm:$0xff]
  %v43 = vld [vmem:[%s2] sm:$0xff]
  %45 = vset.pattern.permute.xlu0 0
  %46 = vperm.xlu0 %45, %v43
  %v47 = vpop.permute.xlu0 %46
  %v76 = vunpack.c.l.b16 %v16
  %v77 = vunpack.c.h.b16 %v16
  %v78 = vunpack.c.l.b16 %v17
  %v79 = vunpack.c.h.b16 %v17
  %v80 = vunpack.c.l.b16 %v18
  %v81 = vunpack.c.h.b16 %v18
  %v82 = vunpack.c.l.b16 %v19
  %v83 = vunpack.c.h.b16 %v19
  %v84 = vunpack.c.l.b16 %v20
  %v85 = vunpack.c.h.b16 %v20
  %v86 = vunpack.c.l.b16 %v21
  %v87 = vunpack.c.h.b16 %v21
  %v88 = vunpack.c.l.b16 %v22
  %v89 = vunpack.c.h.b16 %v22
  %v90 = vunpack.c.l.b16 %v23
  %v91 = vunpack.c.h.b16 %v23
  %v92 = vunpack.c.l.b16 %v24
  %v93 = vunpack.c.h.b16 %v24
  %v94 = vunpack.c.l.b16 %v25
  %v95 = vunpack.c.h.b16 %v25
  %v96 = vunpack.c.l.b16 %v26
  %v97 = vunpack.c.h.b16 %v26
  %v98 = vunpack.c.l.b16 %v27
  %v99 = vunpack.c.h.b16 %v27
  %v100 = vunpack.c.l.b16 %v28
  %v101 = vunpack.c.h.b16 %v28
  %v102 = vunpack.c.l.b16 %v29
  %v103 = vunpack.c.h.b16 %v29
  %v104 = vunpack.c.l.b16 %v30
  %v105 = vunpack.c.h.b16 %v30
  %v106 = vunpack.c.l.b16 %v31
  %v107 = vunpack.c.h.b16 %v31
  %v108 = vunpack.c.l.b16 %v32
  %v109 = vunpack.c.h.b16 %v32
  %v110 = vunpack.c.l.b16 %v33
  %v111 = vunpack.c.h.b16 %v33
  %v112 = vunpack.c.l.b16 %v34
  %v113 = vunpack.c.h.b16 %v34
  %v114 = vunpack.c.l.b16 %v35
  %v115 = vunpack.c.h.b16 %v35
  %v116 = vunpack.c.l.b16 %v36
  %v117 = vunpack.c.h.b16 %v36
  %v118 = vunpack.c.l.b16 %v37
  %v119 = vunpack.c.h.b16 %v37
  %v120 = vunpack.c.l.b16 %v38
  %v121 = vunpack.c.h.b16 %v38
  %v122 = vunpack.c.l.b16 %v39
  %v123 = vunpack.c.h.b16 %v39
  %v124 = vunpack.c.l.b16 %v40
  %v125 = vunpack.c.h.b16 %v40
  %v126 = vunpack.c.l.b16 %v41
  %v127 = vunpack.c.h.b16 %v41
  %v128 = vunpack.c.l.b16 %v42
  %v129 = vunpack.c.h.b16 %v42
  %v130 = vpack.c.b16 %v82, %v76
  %v131 = vpack.c.b16 %v83, %v77
  %v132 = vpack.c.b16 %v84, %v78
  %v133 = vpack.c.b16 %v85, %v79
  %v134 = vpack.c.b16 %v86, %v80
  %v135 = vpack.c.b16 %v87, %v81
  %v136 = vpack.c.b16 %v94, %v88
  %v137 = vpack.c.b16 %v95, %v89
  %v138 = vpack.c.b16 %v96, %v90
  %v139 = vpack.c.b16 %v97, %v91
  %v140 = vpack.c.b16 %v98, %v92
  %v141 = vpack.c.b16 %v99, %v93
  %v142 = vpack.c.b16 %v106, %v100
  %v143 = vpack.c.b16 %v107, %v101
  %v144 = vpack.c.b16 %v108, %v102
  %v145 = vpack.c.b16 %v109, %v103
  %v146 = vpack.c.b16 %v110, %v104
  %v147 = vpack.c.b16 %v111, %v105
  %v148 = vpack.c.b16 %v118, %v112
  %v149 = vpack.c.b16 %v119, %v113
  %v150 = vpack.c.b16 %v120, %v114
  %v151 = vpack.c.b16 %v121, %v115
  %v152 = vpack.c.b16 %v122, %v116
  %v153 = vpack.c.b16 %v123, %v117
  %v154 = vpack.c.b16 %v124, %v124
  %v155 = vpack.c.b16 %v125, %v125
  %v156 = vpack.c.b16 %v126, %v126
  %v157 = vpack.c.b16 %v127, %v127
  %v158 = vpack.c.b16 %v128, %v128
  %v159 = vpack.c.b16 %v129, %v129
  %vm184 = vcmask 588800
  %v186 = vsel %vm184, %v15, 0
  %vm188 = vcmask 1043456
  %v190 = vsel %vm188, %v154, 0
  %v193 = vsel %vm188, %v155, 0
  %v196 = vsel %vm188, %v156, 0
  %v199 = vsel %vm188, %v157, 0
  %v202 = vsel %vm188, %v158, 0
  %v205 = vsel %vm188, %v159, 0
  %207 = vmatpush.bf16.msra.mxu0 0
  %208 = vmatpush.bf16.msra.mxu0 0
  %209 = vmatpush.bf16.msra.mxu0 0
  %210 = vmatpush.bf16.msra.mxu0 %v190
  %211 = vmatpush.bf16.msra.mxu0 %v148
  %212 = vmatpush.bf16.msra.mxu0 %v142
  %213 = vmatpush.bf16.msra.mxu0 %v136
  %214 = vmatpush.bf16.msra.mxu0 %v130
  %215 = vmatmul.bf16.gmra.mxu0 %v186
  %v216 = vpop.f32.mrf.mxu0
  %v217 = vadd.f32 %v47, %v216
  %v218 = vpop.f32.mrf.mxu0
  %219 = vdwg.mxu0
  %220 = vmatpush.bf16.msra.mxu0 0
  %221 = vmatpush.bf16.msra.mxu0 0
  %222 = vmatpush.bf16.msra.mxu0 0
  %223 = vmatpush.bf16.msra.mxu0 %v193
  %224 = vmatpush.bf16.msra.mxu0 %v149
  %225 = vmatpush.bf16.msra.mxu0 %v143
  %226 = vmatpush.bf16.msra.mxu0 %v137
  %227 = vmatpush.bf16.msra.mxu0 %v131
  %228 = vmatmul.bf16.gmra.mxu0 %v186
  %v229 = vpop.f32.mrf.mxu0
  %v230 = vadd.f32 %v47, %v229
  %v231 = vpop.f32.mrf.mxu0
  %232 = vdwg.mxu0
  %233 = vmatpush.bf16.msra.mxu0 0
  %234 = vmatpush.bf16.msra.mxu0 0
  %235 = vmatpush.bf16.msra.mxu0 0
  %236 = vmatpush.bf16.msra.mxu0 %v196
  %237 = vmatpush.bf16.msra.mxu0 %v150
  %238 = vmatpush.bf16.msra.mxu0 %v144
  %239 = vmatpush.bf16.msra.mxu0 %v138
  %240 = vmatpush.bf16.msra.mxu0 %v132
  %241 = vmatmul.bf16.gmra.mxu0 %v186
  %v242 = vpop.f32.mrf.mxu0
  %v243 = vadd.f32 %v47, %v242
  %v244 = vpop.f32.mrf.mxu0
  %245 = vdwg.mxu0
  %246 = vmatpush.bf16.msra.mxu0 0
  %247 = vmatpush.bf16.msra.mxu0 0
  %248 = vmatpush.bf16.msra.mxu0 0
  %249 = vmatpush.bf16.msra.mxu0 %v199
  %250 = vmatpush.bf16.msra.mxu0 %v151
  %251 = vmatpush.bf16.msra.mxu0 %v145
  %252 = vmatpush.bf16.msra.mxu0 %v139
  %253 = vmatpush.bf16.msra.mxu0 %v133
  %254 = vmatmul.bf16.gmra.mxu0 %v186
  %v255 = vpop.f32.mrf.mxu0
  %v256 = vadd.f32 %v47, %v255
  %v257 = vpop.f32.mrf.mxu0
  %258 = vdwg.mxu0
  %259 = vmatpush.bf16.msra.mxu0 0
  %260 = vmatpush.bf16.msra.mxu0 0
  %261 = vmatpush.bf16.msra.mxu0 0
  %262 = vmatpush.bf16.msra.mxu0 %v202
  %263 = vmatpush.bf16.msra.mxu0 %v152
  %264 = vmatpush.bf16.msra.mxu0 %v146
  %265 = vmatpush.bf16.msra.mxu0 %v140
  %266 = vmatpush.bf16.msra.mxu0 %v134
  %267 = vmatmul.bf16.gmra.mxu0 %v186
  %v268 = vpop.f32.mrf.mxu0
  %v269 = vadd.f32 %v47, %v268
  %v270 = vpop.f32.mrf.mxu0
  %271 = vdwg.mxu0
  %272 = vmatpush.bf16.msra.mxu0 0
  %273 = vmatpush.bf16.msra.mxu0 0
  %274 = vmatpush.bf16.msra.mxu0 0
  %275 = vmatpush.bf16.msra.mxu0 %v205
  %276 = vmatpush.bf16.msra.mxu0 %v153
  %277 = vmatpush.bf16.msra.mxu0 %v147
  %278 = vmatpush.bf16.msra.mxu0 %v141
  %279 = vmatpush.bf16.msra.mxu0 %v135
  %280 = vmatmul.bf16.gmra.mxu0 %v186
  %v281 = vpop.f32.mrf.mxu0
  %v282 = vadd.f32 %v47, %v281
  %v283 = vpop.f32.mrf.mxu0
  %284 = vdwg.mxu0
  %v285 = vmax.f32 %v217, 0.0
  %v286 = vmax.f32 %v230, 0.0
  %v287 = vmax.f32 %v243, 0.0
  %v288 = vmax.f32 %v256, 0.0
  %v289 = vmax.f32 %v269, 0.0
  %v290 = vmax.f32 %v282, 0.0
  %v291 = vpack.c.bf16 %v286, %v285
  %v292 = vpack.c.bf16 %v288, %v287
  %v293 = vpack.c.bf16 %v290, %v289
  %294 = vst [vmem:[%s3] sm:$0xff] %v291
  %295 = vst [vmem:[%s3 + $0x8] sm:$0xff] %v292
  %vm296 = vcmask 64516
  %vm297 = vmor %vm296, %vm188
  %298 = vst.msk [vmem:[%s3 + $0x10] sm:$0xff] %vm297, %v293
  // Predicated region
  $region14: #{_lambda_.5} parent=0 // pred_check
    _
  $region15: #{_lambda_.5} parent=0 // pred_check_branch
    %300 = sbr.rel (0) target = $region17
  $region16: #{_lambda_.5} parent=0 // pred_region
    _
  $region17: #{_lambda_.5} parent=0 // pred_fallthru
    _
  // Predicated region
  $region18: #{_lambda_.5} parent=0 // pred_check
    _
  $region19: #{_lambda_.5} parent=0 // pred_check_branch
    %302 = sbr.rel (0) target = $region21
  $region20: #{_lambda_.5} parent=0 // pred_region
    _
  $region21: #{_lambda_.5} parent=0 // pred_fallthru
    _

// kernel: _lambda_.6
$region0: #{_lambda_.6}
  #allocation0 [shape = 'u32[]', space=smem, size = 0x4, offset = 0x4, fixed_abs, tag = 'smem constant byte address 0x4 - core index']
  #allocation1 [shape = 'u32[72,128]{1,0:T(1,128)}', space=vmem, size = 0x9000, scoped, tag = 'internal scratch']
  %s0 = inlined_call_operand.vmem [shape: bf16[8,72], index: 0, kind: input, shape index: {}]
  %s1 = inlined_call_operand.vmem [shape: bf16[72,162], index: 1, kind: input, shape index: {}]
  %s2 = inlined_call_operand.vmem [shape: f32[8,1], index: 2, kind: input, shape index: {}]
  %s3 = inlined_call_operand.vmem [shape: bf16[8,162], index: 3, kind: output, shape index: {}]
  %s4 = sld [smem:[#allocation0]]
  $region22: #{_lambda_.6} parent=0
    _
  %s6 = ssub.s32 1, %s4
  %s7 = scalar_select 0, %s6, %s4
  // Predicated region
  $region2: #{_lambda_.6} parent=0 // pred_check
    _
  $region3: #{_lambda_.6} parent=0 // pred_check_branch
    %9 = sbr.rel (0) target = $region5
  $region4: #{_lambda_.6} parent=0 // pred_region
    _
  $region5: #{_lambda_.6} parent=0 // pred_fallthru
    _
  // Predicated region
  $region6: #{_lambda_.6} parent=0 // pred_check
    _
  $region7: #{_lambda_.6} parent=0 // pred_check_branch
    %11 = sbr.rel (0) target = $region9
  $region8: #{_lambda_.6} parent=0 // pred_region
    _
  $region9: #{_lambda_.6} parent=0 // pred_fallthru
    _
  // Predicated region
  $region10: #{_lambda_.6} parent=0 // pred_check
    _
  $region11: #{_lambda_.6} parent=0 // pred_check_branch
    %13 = sbr.rel (0) target = $region13
  $region12: #{_lambda_.6} parent=0 // pred_region
    _
  $region13: #{_lambda_.6} parent=0 // pred_fallthru
    _
  %v15 = vld [vmem:[%s0] sm:$0xf]
  %v16 = vld [vmem:[%s1] sm:$0xff]
  %v17 = vld [vmem:[%s1 + $0x8] sm:$0xff]
  %v18 = vld [vmem:[%s1 + $0x10] sm:$0xff]
  %v19 = vld [vmem:[%s1 + $0x18] sm:$0xff]
  %v20 = vld [vmem:[%s1 + $0x20] sm:$0xff]
  %v21 = vld [vmem:[%s1 + $0x28] sm:$0xff]
  %v22 = vld [vmem:[%s1 + $0x30] sm:$0xff]
  %v23 = vld [vmem:[%s1 + $0x38] sm:$0xff]
  %v24 = vld [vmem:[%s1 + $0x40] sm:$0xff]
  %v25 = vld [vmem:[%s2] sm:$0xff]
  %27 = vset.pattern.permute.xlu0 0
  %28 = vperm.xlu0 %27, %v25
  %v29 = vpop.permute.xlu0 %28
  %v40 = vunpack.c.l.b16 %v16
  %v41 = vunpack.c.h.b16 %v16
  %v42 = vunpack.c.l.b16 %v17
  %v43 = vunpack.c.h.b16 %v17
  %v44 = vunpack.c.l.b16 %v18
  %v45 = vunpack.c.h.b16 %v18
  %v46 = vunpack.c.l.b16 %v19
  %v47 = vunpack.c.h.b16 %v19
  %v48 = vunpack.c.l.b16 %v20
  %v49 = vunpack.c.h.b16 %v20
  %v50 = vunpack.c.l.b16 %v21
  %v51 = vunpack.c.h.b16 %v21
  %v52 = vunpack.c.l.b16 %v22
  %v53 = vunpack.c.h.b16 %v22
  %v54 = vunpack.c.l.b16 %v23
  %v55 = vunpack.c.h.b16 %v23
  %v56 = vunpack.c.l.b16 %v24
  %v57 = vunpack.c.h.b16 %v24
  %v58 = vpack.c.b16 %v42, %v40
  %v59 = vpack.c.b16 %v43, %v41
  %v60 = vpack.c.b16 %v46, %v44
  %v61 = vpack.c.b16 %v47, %v45
  %v62 = vpack.c.b16 %v50, %v48
  %v63 = vpack.c.b16 %v51, %v49
  %v64 = vpack.c.b16 %v54, %v52
  %v65 = vpack.c.b16 %v55, %v53
  %v66 = vpack.c.b16 %v56, %v56
  %v67 = vpack.c.b16 %v57, %v57
  %vm76 = vcmask 588800
  %v78 = vsel %vm76, %v15, 0
  %vm80 = vcmask 1043456
  %v82 = vsel %vm80, %v66, 0
  %v85 = vsel %vm80, %v67, 0
  %87 = vmatpush.bf16.msra.mxu0 0
  %88 = vmatpush.bf16.msra.mxu0 0
  %89 = vmatpush.bf16.msra.mxu0 0
  %90 = vmatpush.bf16.msra.mxu0 %v82
  %91 = vmatpush.bf16.msra.mxu0 %v64
  %92 = vmatpush.bf16.msra.mxu0 %v62
  %93 = vmatpush.bf16.msra.mxu0 %v60
  %94 = vmatpush.bf16.msra.mxu0 %v58
  %95 = vmatmul.bf16.gmra.mxu0 %v78
  %v96 = vpop.f32.mrf.mxu0
  %v97 = vadd.f32 %v29, %v96
  %v98 = vpop.f32.mrf.mxu0
  %99 = vdwg.mxu0
  %100 = vmatpush.bf16.msra.mxu0 0
  %101 = vmatpush.bf16.msra.mxu0 0
  %102 = vmatpush.bf16.msra.mxu0 0
  %103 = vmatpush.bf16.msra.mxu0 %v85
  %104 = vmatpush.bf16.msra.mxu0 %v65
  %105 = vmatpush.bf16.msra.mxu0 %v63
  %106 = vmatpush.bf16.msra.mxu0 %v61
  %107 = vmatpush.bf16.msra.mxu0 %v59
  %108 = vmatmul.bf16.gmra.mxu0 %v78
  %v109 = vpop.f32.mrf.mxu0
  %v110 = vadd.f32 %v29, %v109
  %v111 = vpop.f32.mrf.mxu0
  %112 = vdwg.mxu0
  %v113 = vmax.f32 %v97, 0.0
  %v114 = vmax.f32 %v110, 0.0
  %v115 = vpack.c.bf16 %v114, %v113
  %vm116 = vcmask 277508
  %vm117 = vmor %vm116, %vm80
  %118 = vst.msk [vmem:[%s3] sm:$0xff] %vm117, %v115
  // Predicated region
  $region14: #{_lambda_.6} parent=0 // pred_check
    _
  $region15: #{_lambda_.6} parent=0 // pred_check_branch
    %120 = sbr.rel (0) target = $region17
  $region16: #{_lambda_.6} parent=0 // pred_region
    _
  $region17: #{_lambda_.6} parent=0 // pred_fallthru
    _
  // Predicated region
  $region18: #{_lambda_.6} parent=0 // pred_check
    _
  $region19: #{_lambda_.6} parent=0 // pred_check_branch
    %122 = sbr.rel (0) target = $region21
  $region20: #{_lambda_.6} parent=0 // pred_region
    _
  $region21: #{_lambda_.6} parent=0 // pred_fallthru
    _

</llo_original>
